<compile_context>
chip_gen: v6e
topology: v6e:2x2x1
jax: 0.10.0
libtpu: 0.0.40
codegen_flags: <defaults>
</compile_context>

<pallas_src>
import numpy as np
import jax
import jax.numpy as jnp
from jax.experimental import pallas as pl
from jax.experimental.pallas import tpu as pltpu

PAD = 128   # lane padding for the hidden/output axes
SUB = 8     # sublane padding for the tiny input axes


def odefunc_kernel(xu_ref, w1_ref, b1_ref, w2_ref, b2_ref, al_ref, o_ref):
    # xu_ref : SMEM (8,)      f32  -> [x0, x1, x2, x3, u, 0, 0, 0]
    # w1_ref : VMEM (8, 128)  f32  -> W1^T padded   (5 in -> 50 hidden on lanes)
    # b1_ref : VMEM (1, 128)  f32
    # w2_ref : VMEM (128,128) f32  -> (WL @ W2)^T padded (50 hidden -> 4 out)
    # b2_ref : VMEM (1, 128)  f32  -> WL @ b2 padded
    # al_ref : VMEM (8, 128)  f32  -> AL^T padded   (4 in -> 4 out)
    # o_ref  : VMEM (1, 128)  f32  -> dx in lanes 0..3

    # First layer as 5 scalar*vector FMAs on the VPU (hidden dim on lanes):
    # cheaper than an M=1 MXU matmul (no MXU fill/drain on the critical path).
    h_pre = b1_ref[...]
    for i in range(5):
        h_pre = h_pre + xu_ref[i] * w1_ref[pl.ds(i, 1), :]
    h = jnp.tanh(h_pre)                                           # (1, 128)

    # Fused second layer + WL: single MXU matmul (K = 50 padded to 128).
    fx = (jnp.dot(h, w2_ref[...], preferred_element_type=jnp.float32)
          + b2_ref[...])                                          # (1, 128)

    # AL @ x (AL is a fixed selection matrix) as 4 VPU FMAs reusing xu scalars.
    alx = xu_ref[0] * al_ref[pl.ds(0, 1), :]
    for i in range(1, 4):
        alx = alx + xu_ref[i] * al_ref[pl.ds(i, 1), :]

    o_ref[...] = fx + alx


def make_params(key):
    """Deterministic synthetic parameters matching ODEFunc.__init__ shapes."""
    k1, k2 = jax.random.split(key)
    # torch nn.Linear weights are (out, in); init normal(0, 0.1), bias = 0
    W1 = 0.1 * jax.random.normal(k1, (50, 5), jnp.float32)
    b1 = jnp.zeros((50,), jnp.float32)
    W2 = 0.1 * jax.random.normal(k2, (2, 50), jnp.float32)
    b2 = jnp.zeros((2,), jnp.float32)
    AL = jnp.array([[0.0, 1.0, 0.0, 0.0],
                    [0.0, 0.0, 0.0, 0.0],
                    [0.0, 0.0, 0.0, 1.0],
                    [0.0, 0.0, 0.0, 0.0]], jnp.float32)   # (4, 4), no bias
    WL = jnp.array([[0.0, 0.0],
                    [1.0, 0.0],
                    [0.0, 0.0],
                    [0.0, 1.0]], jnp.float32)              # (4, 2), no bias
    return dict(W1=W1, b1=b1, W2=W2, b2=b2, AL=AL, WL=WL)


def prepare_params(params):
    """One-time: fold WL into layer 2 and pad everything to TPU-friendly tiles."""
    W1 = params["W1"].astype(jnp.float32)   # (50, 5)
    b1 = params["b1"].astype(jnp.float32)   # (50,)
    W2 = params["W2"].astype(jnp.float32)   # (2, 50)
    b2 = params["b2"].astype(jnp.float32)   # (2,)
    WL = params["WL"].astype(jnp.float32)   # (4, 2)
    AL = params["AL"].astype(jnp.float32)   # (4, 4)

    # WL(W2 h + b2) = (WL @ W2) h + WL @ b2
    W2f = WL @ W2                            # (4, 50)
    b2f = WL @ b2                            # (4,)

    w1_p = jnp.zeros((SUB, PAD), jnp.float32).at[:5, :50].set(W1.T)    # (8,128)
    b1_p = jnp.zeros((1, PAD), jnp.float32).at[0, :50].set(b1)         # (1,128)
    w2_p = jnp.zeros((PAD, PAD), jnp.float32).at[:50, :4].set(W2f.T)   # (128,128)
    b2_p = jnp.zeros((1, PAD), jnp.float32).at[0, :4].set(b2f)         # (1,128)
    al_p = jnp.zeros((SUB, PAD), jnp.float32).at[:4, :4].set(AL.T)     # (8,128)
    return dict(w1=w1_p, b1=b1_p, w2=w2_p, b2=b2_p, al=al_p)


def ode_func_forward(t, x, prepared, u_fun):
    """Jittable forward. `u_fun` must be jnp-traceable.

    Note: the reference computes `idx = int(t // Ts)` but never uses it; it is
    dropped here (a host-side int() would force a sync / break jit)."""
    u = jnp.asarray(u_fun(t), jnp.float32).reshape(())
    xu = (jnp.zeros((SUB,), jnp.float32)
          .at[:4].set(x.astype(jnp.float32))
          .at[4].set(u))                                   # SMEM scalars

    smem = pl.BlockSpec(memory_space=pltpu.MemorySpace.SMEM)
    vmem = pl.BlockSpec(memory_space=pltpu.MemorySpace.VMEM)
    out = pl.pallas_call(
        odefunc_kernel,
        out_shape=jax.ShapeDtypeStruct((1, PAD), jnp.float32),
        in_specs=[smem, vmem, vmem, vmem, vmem, vmem],
        out_specs=vmem,
    )(xu, prepared["w1"], prepared["b1"], prepared["w2"],
      prepared["b2"], prepared["al"])

    return out[0, :4]                                      # dx: (4,)


if __name__ == "__main__":
    key = jax.random.PRNGKey(0)
    kp, kx = jax.random.split(key)

    params = make_params(kp)
    prepared = prepare_params(params)                      # padding hoisted: runs once

    x = jax.random.normal(kx, (4,), jnp.float32)           # state [pos, vel, theta, omega]
    t_val = 0.37
    t = jnp.asarray(t_val, jnp.float32)
    u_fun = lambda tt: jnp.sin(tt)                         # synthetic control input

    fwd = jax.jit(lambda tt, xx: ode_func_forward(tt, xx, prepared, u_fun))
    dx = jax.block_until_ready(fwd(t, x))

    # pure-numpy reference check (unfused math, float64)
    xn = np.asarray(x, np.float64)
    W1 = np.asarray(params["W1"], np.float64)
    b1 = np.asarray(params["b1"], np.float64)
    W2 = np.asarray(params["W2"], np.float64)
    b2 = np.asarray(params["b2"], np.float64)
    WL = np.asarray(params["WL"], np.float64)
    AL = np.asarray(params["AL"], np.float64)
    xu_ref = np.concatenate([xn, np.array(np.sin(t_val)).reshape(1)])
    h_ref = np.tanh(xu_ref @ W1.T + b1)
    fx_ref = h_ref @ W2.T + b2
    dx_ref = fx_ref @ WL.T + xn @ AL.T

    np.testing.assert_allclose(np.asarray(dx), dx_ref, rtol=1e-5, atol=1e-5)
    print("KERNEL_OK")
</pallas_src>

<mosaic_0001>
module attributes {stable_mosaic.version = 11 : i64} {
  func.func @odefunc_kernel(%arg0: memref<8xf32, #tpu.memory_space<smem>>, %arg1: memref<8x128xf32, #tpu.memory_space<vmem>>, %arg2: memref<1x128xf32, #tpu.memory_space<vmem>>, %arg3: memref<128x128xf32, #tpu.memory_space<vmem>>, %arg4: memref<1x128xf32, #tpu.memory_space<vmem>>, %arg5: memref<8x128xf32, #tpu.memory_space<vmem>>, %arg6: memref<1x128xf32, #tpu.memory_space<vmem>>) attributes {dimension_semantics = [], scalar_prefetch = 0 : i64, scratch_operands = 0 : i64, tpu.core_type = #tpu.core_type<tc>} {
    %c0 = arith.constant 0 : index
    %c0_0 = arith.constant 0 : index
    %0 = vector.load %arg2[%c0, %c0_0] : memref<1x128xf32, #tpu.memory_space<vmem>>, vector<1x128xf32>
    %c0_1 = arith.constant 0 : index
    %1 = memref.load %arg0[%c0_1] : memref<8xf32, #tpu.memory_space<smem>>
    %c0_2 = arith.constant 0 : index
    %c0_3 = arith.constant 0 : index
    %2 = vector.load %arg1[%c0_2, %c0_3] : memref<8x128xf32, #tpu.memory_space<vmem>>, vector<1x128xf32>
    %3 = vector.broadcast %1 : f32 to vector<1x128xf32>
    %4 = arith.mulf %3, %2 : vector<1x128xf32>
    %5 = arith.addf %0, %4 : vector<1x128xf32>
    %c1 = arith.constant 1 : index
    %6 = memref.load %arg0[%c1] : memref<8xf32, #tpu.memory_space<smem>>
    %c1_4 = arith.constant 1 : index
    %c0_5 = arith.constant 0 : index
    %7 = vector.load %arg1[%c1_4, %c0_5] : memref<8x128xf32, #tpu.memory_space<vmem>>, vector<1x128xf32>
    %8 = vector.broadcast %6 : f32 to vector<1x128xf32>
    %9 = arith.mulf %8, %7 : vector<1x128xf32>
    %10 = arith.addf %5, %9 : vector<1x128xf32>
    %c2 = arith.constant 2 : index
    %11 = memref.load %arg0[%c2] : memref<8xf32, #tpu.memory_space<smem>>
    %c2_6 = arith.constant 2 : index
    %c0_7 = arith.constant 0 : index
    %12 = vector.load %arg1[%c2_6, %c0_7] : memref<8x128xf32, #tpu.memory_space<vmem>>, vector<1x128xf32>
    %13 = vector.broadcast %11 : f32 to vector<1x128xf32>
    %14 = arith.mulf %13, %12 : vector<1x128xf32>
    %15 = arith.addf %10, %14 : vector<1x128xf32>
    %c3 = arith.constant 3 : index
    %16 = memref.load %arg0[%c3] : memref<8xf32, #tpu.memory_space<smem>>
    %c3_8 = arith.constant 3 : index
    %c0_9 = arith.constant 0 : index
    %17 = vector.load %arg1[%c3_8, %c0_9] : memref<8x128xf32, #tpu.memory_space<vmem>>, vector<1x128xf32>
    %18 = vector.broadcast %16 : f32 to vector<1x128xf32>
    %19 = arith.mulf %18, %17 : vector<1x128xf32>
    %20 = arith.addf %15, %19 : vector<1x128xf32>
    %c4 = arith.constant 4 : index
    %21 = memref.load %arg0[%c4] : memref<8xf32, #tpu.memory_space<smem>>
    %c4_10 = arith.constant 4 : index
    %c0_11 = arith.constant 0 : index
    %22 = vector.load %arg1[%c4_10, %c0_11] : memref<8x128xf32, #tpu.memory_space<vmem>>, vector<1x128xf32>
    %23 = vector.broadcast %21 : f32 to vector<1x128xf32>
    %24 = arith.mulf %23, %22 : vector<1x128xf32>
    %25 = arith.addf %20, %24 : vector<1x128xf32>
    %26 = math.tanh %25 : vector<1x128xf32>
    %c0_12 = arith.constant 0 : index
    %c0_13 = arith.constant 0 : index
    %27 = vector.load %arg3[%c0_12, %c0_13] : memref<128x128xf32, #tpu.memory_space<vmem>>, vector<128x128xf32>
    %cst = arith.constant dense<0.000000e+00> : vector<1x128xf32>
    %28 = tpu.matmul %26, %27, %cst {dimension_numbers = #tpu.dot_dimension_numbers<[1], [0], [0], [1], [0, 0, 1, 1], [], []>} : vector<1x128xf32>, vector<128x128xf32>, vector<1x128xf32> -> vector<1x128xf32>
    %c0_14 = arith.constant 0 : index
    %c0_15 = arith.constant 0 : index
    %29 = vector.load %arg4[%c0_14, %c0_15] : memref<1x128xf32, #tpu.memory_space<vmem>>, vector<1x128xf32>
    %30 = arith.addf %28, %29 : vector<1x128xf32>
    %c0_16 = arith.constant 0 : index
    %31 = memref.load %arg0[%c0_16] : memref<8xf32, #tpu.memory_space<smem>>
    %c0_17 = arith.constant 0 : index
    %c0_18 = arith.constant 0 : index
    %32 = vector.load %arg5[%c0_17, %c0_18] : memref<8x128xf32, #tpu.memory_space<vmem>>, vector<1x128xf32>
    %33 = vector.broadcast %31 : f32 to vector<1x128xf32>
    %34 = arith.mulf %33, %32 : vector<1x128xf32>
    %c1_19 = arith.constant 1 : index
    %35 = memref.load %arg0[%c1_19] : memref<8xf32, #tpu.memory_space<smem>>
    %c1_20 = arith.constant 1 : index
    %c0_21 = arith.constant 0 : index
    %36 = vector.load %arg5[%c1_20, %c0_21] : memref<8x128xf32, #tpu.memory_space<vmem>>, vector<1x128xf32>
    %37 = vector.broadcast %35 : f32 to vector<1x128xf32>
    %38 = arith.mulf %37, %36 : vector<1x128xf32>
    %39 = arith.addf %34, %38 : vector<1x128xf32>
    %c2_22 = arith.constant 2 : index
    %40 = memref.load %arg0[%c2_22] : memref<8xf32, #tpu.memory_space<smem>>
    %c2_23 = arith.constant 2 : index
    %c0_24 = arith.constant 0 : index
    %41 = vector.load %arg5[%c2_23, %c0_24] : memref<8x128xf32, #tpu.memory_space<vmem>>, vector<1x128xf32>
    %42 = vector.broadcast %40 : f32 to vector<1x128xf32>
    %43 = arith.mulf %42, %41 : vector<1x128xf32>
    %44 = arith.addf %39, %43 : vector<1x128xf32>
    %c3_25 = arith.constant 3 : index
    %45 = memref.load %arg0[%c3_25] : memref<8xf32, #tpu.memory_space<smem>>
    %c3_26 = arith.constant 3 : index
    %c0_27 = arith.constant 0 : index
    %46 = vector.load %arg5[%c3_26, %c0_27] : memref<8x128xf32, #tpu.memory_space<vmem>>, vector<1x128xf32>
    %47 = vector.broadcast %45 : f32 to vector<1x128xf32>
    %48 = arith.mulf %47, %46 : vector<1x128xf32>
    %49 = arith.addf %44, %48 : vector<1x128xf32>
    %50 = arith.addf %30, %49 : vector<1x128xf32>
    %c0_28 = arith.constant 0 : index
    %c0_29 = arith.constant 0 : index
    %51 = vector.load %arg6[%c0_28, %c0_29] : memref<1x128xf32, #tpu.memory_space<vmem>>, vector<1x128xf32>
    tpu.vector_store %arg6[%c0_28, %c0_29], %50 {strides = array<i32>} : memref<1x128xf32, #tpu.memory_space<vmem>>, vector<1x128xf32>,
    return
  }
}

</mosaic_0001>

<llo_original>
// kernel: _lambda_.1
$region0: #{_lambda_.1}
  #allocation0 [shape = 'u32[]', space=smem, size = 0x4, offset = 0x4, fixed_abs, tag = 'smem constant byte address 0x4 - core index']
  #allocation1 [shape = 'u32[144,128]{1,0:T(1,128)}', space=vmem, size = 0x12000, scoped, tag = 'internal scratch']
  %s0 = inlined_call_operand.vmem [shape: f32[8], index: 0, kind: input, shape index: {}]
  %s1 = inlined_call_operand.vmem [shape: f32[8,128], index: 1, kind: input, shape index: {}]
  %s2 = inlined_call_operand.vmem [shape: f32[1,128], index: 2, kind: input, shape index: {}, may-alias: {2,4}]
  %s3 = inlined_call_operand.hbm [shape: f32[128,128], index: 3, kind: input, shape index: {}]
  %s4 = inlined_call_operand.vmem [shape: f32[1,128], index: 4, kind: input, shape index: {}, may-alias: {2,4}]
  %s5 = inlined_call_operand.vmem [shape: f32[8,128], index: 5, kind: input, shape index: {}]
  %s6 = inlined_call_operand.vmem [shape: f32[1,128], index: 6, kind: output, shape index: {}]
  %s7 = sld [smem:[#allocation0]]
  $region42: #{_lambda_.1} parent=0
    _
  %s9 = ssub.s32 1, %s7
  %s10 = scalar_select 0, %s9, %s7
  $region1: #{_lambda_.1} parent=0
    #allocation2 [shape = 'u8[512]{0}', space=smem, size = 0x200, scoped, tag = 'input window, operand 0, single buffered']
    #allocation3 [shape = 's32[1]{0}', space=sflag, size = 0x4, scoped, tag = 'scoped memory for _lambda_.1']
    #allocation4 [shape = 's32[1]{0}', space=sflag, size = 0x4, scoped, tag = 'scoped memory for _lambda_.1']
    #allocation5 [shape = 'u8[65536]{0}', space=vmem, size = 0x10000, scoped, tag = 'input window, operand 3, single buffered']
    %11 = vsyncpa [#allocation4], 0
    %12 = vsyncpa [#allocation3], 0
    // Predicated region
    $region2: #{_lambda_.1} parent=1 // pred_check
      _
    $region3: #{_lambda_.1} parent=1 // pred_check_branch
      %14 = sbr.rel (0) target = $region5
    $region4: #{_lambda_.1} parent=1 // pred_region
      %s16 = ssub.s32 16, 16
      %17 = vsyncadd [#allocation4], %s16
      %s19 = sshll.u32 %s0, 4
      %s20 = int_to_ptr.vmem [resolvable:$true] %s19
      %22 = dma.vmem_to_smem %s20, 16, [#allocation2], [#allocation4]
    $region5: #{_lambda_.1} parent=1 // pred_fallthru
      _
    // Predicated region
    $region6: #{_lambda_.1} parent=1 // pred_check
      _
    $region7: #{_lambda_.1} parent=1 // pred_check_branch
      %24 = sbr.rel (0) target = $region9
    $region8: #{_lambda_.1} parent=1 // pred_region
      _
    $region9: #{_lambda_.1} parent=1 // pred_fallthru
      _
    // Predicated region
    $region10: #{_lambda_.1} parent=1 // pred_check
      _
    $region11: #{_lambda_.1} parent=1 // pred_check_branch
      %26 = sbr.rel (0) target = $region13
    $region12: #{_lambda_.1} parent=1 // pred_region
      _
    $region13: #{_lambda_.1} parent=1 // pred_fallthru
      _
    // Predicated region
    $region14: #{_lambda_.1} parent=1 // pred_check
      _
    $region15: #{_lambda_.1} parent=1 // pred_check_branch
      %28 = sbr.rel (0) target = $region17
    $region16: #{_lambda_.1} parent=1 // pred_region
      %s30 = ssub.s32 2048, 2048
      %31 = vsyncadd [#allocation3], %s30
      %s32 = sshll.u32 [#allocation5], 4
      %s33 = int_to_ptr.vmem [resolvable:$true] %s32
      %38 = dma.hbm_to_vmem [thread:$0]  %s3, 2048, %s33, [#allocation3], 128, 128, 8
    $region17: #{_lambda_.1} parent=1 // pred_fallthru
      _
    // Predicated region
    $region18: #{_lambda_.1} parent=1 // pred_check
      _
    $region19: #{_lambda_.1} parent=1 // pred_check_branch
      %40 = sbr.rel (0) target = $region21
    $region20: #{_lambda_.1} parent=1 // pred_region
      _
    $region21: #{_lambda_.1} parent=1 // pred_fallthru
      _
    // Predicated region
    $region22: #{_lambda_.1} parent=1 // pred_check
      _
    $region23: #{_lambda_.1} parent=1 // pred_check_branch
      %42 = sbr.rel (0) target = $region25
    $region24: #{_lambda_.1} parent=1 // pred_region
      _
    $region25: #{_lambda_.1} parent=1 // pred_fallthru
      _
    // Predicated region
    $region26: #{_lambda_.1} parent=1 // pred_check
      _
    $region27: #{_lambda_.1} parent=1 // pred_check_branch
      %44 = sbr.rel (0) target = $region29
    $region28: #{_lambda_.1} parent=1 // pred_region
      %45 = dma.done [#allocation4], 16
    $region29: #{_lambda_.1} parent=1 // pred_fallthru
      _
    // Predicated region
    $region30: #{_lambda_.1} parent=1 // pred_check
      _
    $region31: #{_lambda_.1} parent=1 // pred_check_branch
      %47 = sbr.rel (0) target = $region33
    $region32: #{_lambda_.1} parent=1 // pred_region
      %48 = dma.done [#allocation3], 2048
    $region33: #{_lambda_.1} parent=1 // pred_fallthru
      _
    %49 = sfence
    %v50 = vld [vmem:[%s2] sm:$0x1]
    %s51 = sld [smem:[#allocation2]]
    %v52 = vld [vmem:[%s1] sm:$0x1]
    %v53 = vstv %s51
    %v54 = vmul.f32 %v53, %v52
    %v55 = vadd.f32 %v50, %v54
    %s56 = sld [smem:[#allocation2 + $0x1]]
    %v57 = vld [vmem:[%s1 + $0x1] sm:$0x1]
    %v58 = vstv %s56
    %v59 = vmul.f32 %v58, %v57
    %v60 = vadd.f32 %v55, %v59
    %s61 = sld [smem:[#allocation2 + $0x2]]
    %v62 = vld [vmem:[%s1 + $0x2] sm:$0x1]
    %v63 = vstv %s61
    %v64 = vmul.f32 %v63, %v62
    %v65 = vadd.f32 %v60, %v64
    %s66 = sld [smem:[#allocation2 + $0x3]]
    %v67 = vld [vmem:[%s1 + $0x3] sm:$0x1]
    %v68 = vstv %s66
    %v69 = vmul.f32 %v68, %v67
    %v70 = vadd.f32 %v65, %v69
    %s71 = sld [smem:[#allocation2 + $0x4]]
    %v72 = vld [vmem:[%s1 + $0x4] sm:$0x1]
    %v73 = vstv %s71
    %v74 = vmul.f32 %v73, %v72
    %v75 = vadd.f32 %v70, %v74
    %v76 = vtanh.pop %v75
    %v77 = vld [vmem:[#allocation5] sm:$0xff]
    %v78 = vld [vmem:[#allocation5 + $0x8] sm:$0xff]
    %v79 = vld [vmem:[#allocation5 + $0x10] sm:$0xff]
    %v80 = vld [vmem:[#allocation5 + $0x18] sm:$0xff]
    %v81 = vld [vmem:[#allocation5 + $0x20] sm:$0xff]
    %v82 = vld [vmem:[#allocation5 + $0x28] sm:$0xff]
    %v83 = vld [vmem:[#allocation5 + $0x30] sm:$0xff]
    %v84 = vld [vmem:[#allocation5 + $0x38] sm:$0xff]
    %v85 = vld [vmem:[#allocation5 + $0x40] sm:$0xff]
    %v86 = vld [vmem:[#allocation5 + $0x48] sm:$0xff]
    %v87 = vld [vmem:[#allocation5 + $0x50] sm:$0xff]
    %v88 = vld [vmem:[#allocation5 + $0x58] sm:$0xff]
    %v89 = vld [vmem:[#allocation5 + $0x60] sm:$0xff]
    %v90 = vld [vmem:[#allocation5 + $0x68] sm:$0xff]
    %v91 = vld [vmem:[#allocation5 + $0x70] sm:$0xff]
    %v92 = vld [vmem:[#allocation5 + $0x78] sm:$0xff]
    %v93 = vld [vmem:[%s4] sm:$0x1]
    %94 = vmatprep.subr.mxu0 0.0
    %95 = vmatpush1.msra.mxu0 %v92
    %96 = vmatprep.subr.mxu0 0.0
    %97 = vmatpush1.msra.mxu0 %v91
    %98 = vmatprep.subr.mxu0 0.0
    %99 = vmatpush1.msra.mxu0 %v90
    %100 = vmatprep.subr.mxu0 0.0
    %101 = vmatpush1.msra.mxu0 %v89
    %102 = vmatprep.subr.mxu0 0.0
    %103 = vmatpush1.msra.mxu0 %v88
    %104 = vmatprep.subr.mxu0 0.0
    %105 = vmatpush1.msra.mxu0 %v87
    %106 = vmatprep.subr.mxu0 0.0
    %107 = vmatpush1.msra.mxu0 %v86
    %108 = vmatprep.subr.mxu0 0.0
    %109 = vmatpush1.msra.mxu0 %v85
    %110 = vmatprep.subr.mxu0 0.0
    %111 = vmatpush1.msra.mxu0 %v84
    %112 = vmatprep.subr.mxu0 0.0
    %113 = vmatpush1.msra.mxu0 %v83
    %114 = vmatprep.subr.mxu0 0.0
    %115 = vmatpush1.msra.mxu0 %v82
    %116 = vmatprep.subr.mxu0 0.0
    %117 = vmatpush1.msra.mxu0 %v81
    %118 = vmatprep.subr.mxu0 0.0
    %119 = vmatpush1.msra.mxu0 %v80
    %120 = vmatprep.subr.mxu0 0.0
    %121 = vmatpush1.msra.mxu0 %v79
    %122 = vmatprep.subr.mxu0 0.0
    %123 = vmatpush1.msra.mxu0 %v78
    %124 = vmatprep.subr.mxu0 0.0
    %125 = vmatpush1.msra.mxu0 %v77
    %126 = vmatprep.subr.mxu0 0.0
    %127 = vmatpush2.msra.mxu0 0.0
    %128 = vmatprep.subr.mxu0 0.0
    %129 = vmatpush2.msra.mxu0 0.0
    %130 = vmatprep.subr.mxu0 0.0
    %131 = vmatpush2.msra.mxu0 0.0
    %132 = vmatprep.subr.mxu0 0.0
    %133 = vmatpush2.msra.mxu0 0.0
    %134 = vmatprep.subr.mxu0 0.0
    %135 = vmatpush2.msra.mxu0 0.0
    %136 = vmatprep.subr.mxu0 0.0
    %137 = vmatpush2.msra.mxu0 0.0
    %138 = vmatprep.subr.mxu0 0.0
    %139 = vmatpush2.msra.mxu0 0.0
    %140 = vmatprep.subr.mxu0 0.0
    %141 = vmatpush2.msra.mxu0 0.0
    %142 = vmatprep.subr.mxu0 0.0
    %143 = vmatpush2.msra.mxu0 0.0
    %144 = vmatprep.subr.mxu0 0.0
    %145 = vmatpush2.msra.mxu0 0.0
    %146 = vmatprep.subr.mxu0 0.0
    %147 = vmatpush2.msra.mxu0 0.0
    %148 = vmatprep.subr.mxu0 0.0
    %149 = vmatpush2.msra.mxu0 0.0
    %150 = vmatprep.subr.mxu0 0.0
    %151 = vmatpush2.msra.mxu0 0.0
    %152 = vmatprep.subr.mxu0 0.0
    %153 = vmatpush2.msra.mxu0 0.0
    %154 = vmatprep.subr.mxu0 0.0
    %155 = vmatpush2.msra.mxu0 0.0
    %156 = vmatprep.subr.mxu0 0.0
    %157 = vmatpush2.msra.mxu0 0.0
    %158 = vmatprep.mubr.f32.mxu0 0.0
    %159 = vmatmul.mubr.f32.gmra.mxu0 %v76
    %v160 = vpop.f32.mrf.mxu0
    %v161 = vadd.f32 %v93, %v160
    %v162 = vpop.f32.mrf.mxu0
    %163 = vdwg.mxu0
    %v164 = vld [vmem:[%s5] sm:$0x1]
    %v165 = vmul.f32 %v53, %v164
    %v166 = vld [vmem:[%s5 + $0x1] sm:$0x1]
    %v167 = vmul.f32 %v58, %v166
    %v168 = vadd.f32 %v165, %v167
    %v169 = vld [vmem:[%s5 + $0x2] sm:$0x1]
    %v170 = vmul.f32 %v63, %v169
    %v171 = vadd.f32 %v168, %v170
    %v172 = vld [vmem:[%s5 + $0x3] sm:$0x1]
    %v173 = vmul.f32 %v68, %v172
    %v174 = vadd.f32 %v171, %v173
    %v175 = vadd.f32 %v161, %v174
    %176 = vst [vmem:[%s6] sm:$0x1] %v175
    // Predicated region
    $region34: #{_lambda_.1} parent=1 // pred_check
      _
    $region35: #{_lambda_.1} parent=1 // pred_check_branch
      %178 = sbr.rel (0) target = $region37
    $region36: #{_lambda_.1} parent=1 // pred_region
      _
    $region37: #{_lambda_.1} parent=1 // pred_fallthru
      _
    // Predicated region
    $region38: #{_lambda_.1} parent=1 // pred_check
      _
    $region39: #{_lambda_.1} parent=1 // pred_check_branch
      %180 = sbr.rel (0) target = $region41
    $region40: #{_lambda_.1} parent=1 // pred_region
      _
    $region41: #{_lambda_.1} parent=1 // pred_fallthru
      _
    %181 = vsyncpa [#allocation3], 1
    %182 = vsyncpa [#allocation4], 1

</llo_original>
